<compile_context>
chip_gen: v6e
topology: v6e:2x2x1
jax: 0.10.0
libtpu: 0.0.40
codegen_flags: <defaults>
</compile_context>

<pallas_src>
import functools

import jax
import jax.numpy as jnp
from jax.experimental import pallas as pl
from jax.experimental.pallas import tpu as pltpu


def _round_up(n, m):
    return ((n + m - 1) // m) * m


def _resident_spec(shape):
    """BlockSpec for a grid-invariant (resident) operand; single-buffered when supported."""
    index_map = lambda i: (0,) * len(shape)
    try:
        return pl.BlockSpec(shape, index_map, pipeline_mode=pl.Buffered(1))
    except Exception:  # older jax without pipeline_mode / Buffered: default double-buffer
        return pl.BlockSpec(shape, index_map)


def _choose_tile_b(B, max_tile=1024):
    """Pick (tile_b, B_pad).

    - Batch fits one tile: split into 2 parallel steps if each half is still a
      fat (>=128-row) tile (keeps both v7x TCs busy); else a single step
      (optimal on 1-TC v5e/v6e: no serial-loop overhead).
    - Larger batches: fattest tiles <= max_tile with an even grid length.
    """
    B8 = _round_up(B, 8)
    if B8 <= max_tile:
        half = _round_up((B8 + 1) // 2, 8)
        if half >= 128:
            return half, 2 * half
        return B8, B8
    n_steps = (B8 + max_tile - 1) // max_tile
    if n_steps % 2:                      # even grid length for v7x's 2 TensorCores
        n_steps += 1
    tile = _round_up((B8 + n_steps - 1) // n_steps, 8)
    return tile, tile * n_steps


def _mlp_kernel(x_ref, w1_ref, b1_ref, w2_ref, b2_ref, w3_ref, b3_ref, o_ref):
    # x_ref: (TB, IN) f32 ; w*: bf16 ; b*: (1, N) f32 ; o_ref: (TB, OUT_pad) bf16
    cd = w1_ref.dtype
    x = x_ref[...].astype(cd)                        # in-kernel bf16 cast (no wrapper HBM pass)

    h = jnp.dot(x, w1_ref[...], preferred_element_type=jnp.float32)
    h = jnp.maximum(h + b1_ref[...], 0.0)            # ReLU (dropout = identity in eval)

    h = jnp.dot(h.astype(cd), w2_ref[...], preferred_element_type=jnp.float32)
    h = jnp.maximum(h + b2_ref[...], 0.0)            # ReLU (dropout = identity in eval)

    y = jnp.dot(h.astype(cd), w3_ref[...], preferred_element_type=jnp.float32)
    o_ref[...] = (y + b3_ref[...]).astype(o_ref.dtype)   # bf16 store: halves HBM writeback


@functools.partial(jax.jit, static_argnames=("tile_b", "compute_dtype"))
def hotswap_encoder_mlp(x, params, *, tile_b=None, compute_dtype=jnp.bfloat16):
    """x: (B, in_features) float32. params: dict of f32 weights (fan_in, fan_out) / biases (1, fan_out)."""
    w1, b1, w2, b2, w3, b3 = (params["w1"], params["b1"], params["w2"],
                              params["b2"], params["w3"], params["b3"])
    B, IN = x.shape
    H = w1.shape[1]
    OUT = w3.shape[1]

    # --- pad hidden dim to a lane multiple (module default hidden=100 -> 128).
    #     Padded units: relu(x@0 + 0) = 0 and zero w2/w3 rows -> numerically inert.
    H_pad = max(128, _round_up(H, 128))
    if H_pad != H:
        w1 = jnp.pad(w1, ((0, 0), (0, H_pad - H)))
        b1 = jnp.pad(b1, ((0, 0), (0, H_pad - H)))
        w2 = jnp.pad(w2, ((0, H_pad - H), (0, H_pad - H)))
        b2 = jnp.pad(b2, ((0, 0), (0, H_pad - H)))
        w3 = jnp.pad(w3, ((0, H_pad - H), (0, 0)))

    # --- lane-dense output padding (avoid (tile_b, 1) masked partial stores) ---
    OUT_pad = max(128, _round_up(OUT, 128))
    if OUT_pad != OUT:
        w3 = jnp.pad(w3, ((0, 0), (0, OUT_pad - OUT)))
        b3 = jnp.pad(b3, ((0, 0), (0, OUT_pad - OUT)))

    # --- shape-aware tile selection + minimal batch padding ---
    if tile_b is None:
        tile_b, B_pad = _choose_tile_b(B)
    else:
        B_pad = _round_up(B, tile_b)
    if B_pad != B:
        x = jnp.pad(x, ((0, B_pad - B), (0, 0)))

    # --- weights to bf16 for the MXU (f32 accumulation); biases f32; x stays f32 ---
    w1_c, w2_c, w3_c = (w.astype(compute_dtype) for w in (w1, w2, w3))
    b1_f, b2_f, b3_f = (b.astype(jnp.float32) for b in (b1, b2, b3))

    grid = (B_pad // tile_b,)

    # --- VMEM budget: single-buffered residents + double-buffered x/out tiles
    #     + f32 intermediates; request ~1.5x, cap at 48 MiB (v7x: 64 MiB/TC). ---
    wt_bytes = (IN * H_pad + H_pad * H_pad + H_pad * OUT_pad) * 2
    bias_bytes = (2 * H_pad + OUT_pad) * 4
    io_bytes = 2 * (tile_b * IN * 4 + tile_b * OUT_pad * 2)
    interm_bytes = tile_b * (IN * 2 + 3 * H_pad * 4 + OUT_pad * 4)
    working = wt_bytes + bias_bytes + io_bytes + interm_bytes
    vmem_limit = int(min(48 * 1024 * 1024, max(int(1.5 * working), 8 * 1024 * 1024)))

    flops = 2 * B_pad * (IN * H_pad + H_pad * H_pad + H_pad * OUT_pad)
    bytes_accessed = B_pad * IN * 4 + wt_bytes + bias_bytes + B_pad * OUT_pad * 2

    out = pl.pallas_call(
        _mlp_kernel,
        out_shape=jax.ShapeDtypeStruct((B_pad, OUT_pad), compute_dtype),
        grid_spec=pltpu.PrefetchScalarGridSpec(
            num_scalar_prefetch=0,
            grid=grid,
            in_specs=[
                pl.BlockSpec((tile_b, IN), lambda i: (i, 0)),   # x tile (f32, streamed)
                _resident_spec((IN, H_pad)),                    # w1 (resident)
                _resident_spec((1, H_pad)),                     # b1
                _resident_spec((H_pad, H_pad)),                 # w2
                _resident_spec((1, H_pad)),                     # b2
                _resident_spec((H_pad, OUT_pad)),               # w3 (lane-dense padded)
                _resident_spec((1, OUT_pad)),                   # b3
            ],
            out_specs=pl.BlockSpec((tile_b, OUT_pad), lambda i: (i, 0)),
        ),
        compiler_params=pltpu.CompilerParams(
            dimension_semantics=("parallel",),
            vmem_limit_bytes=vmem_limit,
        ),
        cost_estimate=pl.CostEstimate(
            flops=flops, transcendentals=0, bytes_accessed=bytes_accessed),
    )(x, w1_c, b1_f, w2_c, b2_f, w3_c, b3_f)

    # Strip batch / lane padding; up-cast only the real (B, OUT) slice to f32.
    return out[:B, :OUT].astype(jnp.float32)


def init_params(key, in_features, hidden_features, output_features):
    """Deterministic init matching the module's layer shapes (uniform +-1/sqrt(fan_in),
    same scheme as torch.nn.Linear default). Weights stored (fan_in, fan_out)."""
    ks = jax.random.split(key, 6)

    def lin(kw, kb, fan_in, fan_out):
        bound = 1.0 / jnp.sqrt(fan_in)
        w = jax.random.uniform(kw, (fan_in, fan_out), jnp.float32, -bound, bound)
        b = jax.random.uniform(kb, (1, fan_out), jnp.float32, -bound, bound)
        return w, b

    w1, b1 = lin(ks[0], ks[1], in_features, hidden_features)
    w2, b2 = lin(ks[2], ks[3], hidden_features, hidden_features)
    w3, b3 = lin(ks[4], ks[5], hidden_features, output_features)
    return dict(w1=w1, b1=b1, w2=w2, b2=b2, w3=w3, b3=b3)


def reference_forward(x, p, compute_dtype=jnp.bfloat16):
    """Pure-JAX reference mimicking the kernel's bf16-matmul / f32-accum / bf16-store scheme."""
    cd = compute_dtype
    h = jnp.dot(x.astype(cd), p["w1"].astype(cd),
                preferred_element_type=jnp.float32) + p["b1"]
    h = jnp.maximum(h, 0.0)
    h = jnp.dot(h.astype(cd), p["w2"].astype(cd),
                preferred_element_type=jnp.float32) + p["b2"]
    h = jnp.maximum(h, 0.0)
    y = jnp.dot(h.astype(cd), p["w3"].astype(cd),
                preferred_element_type=jnp.float32) + p["b3"]
    return y.astype(cd).astype(jnp.float32)


def reference_forward_f32(x, p):
    """Full-f32 reference (matches the PyTorch module numerics); loose-tolerance check."""
    h = jnp.maximum(jnp.dot(x, p["w1"]) + p["b1"], 0.0)
    h = jnp.maximum(jnp.dot(h, p["w2"]) + p["b2"], 0.0)
    return jnp.dot(h, p["w3"]) + p["b3"]


if __name__ == "__main__":
    # Shapes consistent with the module (scaled down on the input side):
    # in_features=256 (vs 2048), hidden_features=100 (module default, padded to
    # 128 in the wrapper), hidden_layers=2, output_features=1.
    # B=512 -> tile_b=256, grid of 2 "parallel" steps (keeps both v7x TCs busy).
    B, IN, H, OUT = 512, 256, 100, 1

    key = jax.random.PRNGKey(0)
    kx, kp = jax.random.split(key)
    x = jax.random.normal(kx, (B, IN), dtype=jnp.float32)
    params = init_params(kp, IN, H, OUT)

    y = hotswap_encoder_mlp(x, params)
    y = jax.block_until_ready(y)

    y_ref = reference_forward(x, params)        # matches kernel precision scheme
    y_f32 = reference_forward_f32(x, params)    # f32 module numerics (loose tol)

    assert y.shape == (B, OUT), f"bad output shape {y.shape}"
    assert bool(jnp.all(jnp.isfinite(y))), "non-finite output"
    assert jnp.allclose(y, y_ref, atol=3e-2, rtol=3e-2), "mismatch vs bf16 JAX reference"
    assert jnp.allclose(y, y_f32, atol=7e-2, rtol=7e-2), "excess bf16 drift vs f32 reference"

    print("KERNEL_OK")
</pallas_src>

<mosaic_0001>
module attributes {stable_mosaic.version = 11 : i64} {
  func.func @_mlp_kernel(%arg0: i32, %arg1: memref<256x256xf32, #tpu.memory_space<vmem>>, %arg2: memref<256x128xbf16, #tpu.memory_space<vmem>>, %arg3: memref<1x128xf32, #tpu.memory_space<vmem>>, %arg4: memref<128x128xbf16, #tpu.memory_space<vmem>>, %arg5: memref<1x128xf32, #tpu.memory_space<vmem>>, %arg6: memref<128x128xbf16, #tpu.memory_space<vmem>>, %arg7: memref<1x128xf32, #tpu.memory_space<vmem>>, %arg8: memref<256x128xbf16, #tpu.memory_space<vmem>>) attributes {dimension_semantics = [#tpu.dimension_semantics<parallel>], iteration_bounds = array<i64: 2>, scalar_prefetch = 0 : i64, scratch_operands = 0 : i64, tpu.core_type = #tpu.core_type<tc>, window_params = [{transform_indices = @transform_0, window_bounds = array<i64: 256, 256>}, {pipeline_mode = #tpu.pipeline_mode<synchronous>, transform_indices = @transform_1, window_bounds = array<i64: 256, 128>}, {pipeline_mode = #tpu.pipeline_mode<synchronous>, transform_indices = @transform_2, window_bounds = array<i64: 1, 128>}, {pipeline_mode = #tpu.pipeline_mode<synchronous>, transform_indices = @transform_3, window_bounds = array<i64: 128, 128>}, {pipeline_mode = #tpu.pipeline_mode<synchronous>, transform_indices = @transform_4, window_bounds = array<i64: 1, 128>}, {pipeline_mode = #tpu.pipeline_mode<synchronous>, transform_indices = @transform_5, window_bounds = array<i64: 128, 128>}, {pipeline_mode = #tpu.pipeline_mode<synchronous>, transform_indices = @transform_6, window_bounds = array<i64: 1, 128>}, {transform_indices = @transform_7, window_bounds = array<i64: 256, 128>}]} {
    %c0 = arith.constant 0 : index
    %c0_0 = arith.constant 0 : index
    %0 = vector.load %arg1[%c0, %c0_0] : memref<256x256xf32, #tpu.memory_space<vmem>>, vector<256x256xf32>
    %1 = arith.truncf %0 : vector<256x256xf32> to vector<256x256xbf16>
    %c0_1 = arith.constant 0 : index
    %c0_2 = arith.constant 0 : index
    %2 = vector.load %arg2[%c0_1, %c0_2] : memref<256x128xbf16, #tpu.memory_space<vmem>>, vector<256x128xbf16>
    %cst = arith.constant dense<0.000000e+00> : vector<256x128xf32>
    %3 = tpu.matmul %1, %2, %cst {dimension_numbers = #tpu.dot_dimension_numbers<[1], [0], [0], [1], [0, 0, 1, 1], [], []>} : vector<256x256xbf16>, vector<256x128xbf16>, vector<256x128xf32> -> vector<256x128xf32>
    %c0_3 = arith.constant 0 : index
    %c0_4 = arith.constant 0 : index
    %4 = vector.load %arg3[%c0_3, %c0_4] : memref<1x128xf32, #tpu.memory_space<vmem>>, vector<1x128xf32>
    %5 = vector.broadcast %4 : vector<1x128xf32> to vector<256x128xf32>
    %6 = arith.addf %3, %5 : vector<256x128xf32>
    %cst_5 = arith.constant 0.000000e+00 : f32
    %7 = vector.broadcast %cst_5 : f32 to vector<256x128xf32>
    %8 = arith.maximumf %6, %7 : vector<256x128xf32>
    %9 = arith.truncf %8 : vector<256x128xf32> to vector<256x128xbf16>
    %c0_6 = arith.constant 0 : index
    %c0_7 = arith.constant 0 : index
    %10 = vector.load %arg4[%c0_6, %c0_7] : memref<128x128xbf16, #tpu.memory_space<vmem>>, vector<128x128xbf16>
    %cst_8 = arith.constant dense<0.000000e+00> : vector<256x128xf32>
    %11 = tpu.matmul %9, %10, %cst_8 {dimension_numbers = #tpu.dot_dimension_numbers<[1], [0], [0], [1], [0, 0, 1, 1], [], []>} : vector<256x128xbf16>, vector<128x128xbf16>, vector<256x128xf32> -> vector<256x128xf32>
    %c0_9 = arith.constant 0 : index
    %c0_10 = arith.constant 0 : index
    %12 = vector.load %arg5[%c0_9, %c0_10] : memref<1x128xf32, #tpu.memory_space<vmem>>, vector<1x128xf32>
    %13 = vector.broadcast %12 : vector<1x128xf32> to vector<256x128xf32>
    %14 = arith.addf %11, %13 : vector<256x128xf32>
    %cst_11 = arith.constant 0.000000e+00 : f32
    %15 = vector.broadcast %cst_11 : f32 to vector<256x128xf32>
    %16 = arith.maximumf %14, %15 : vector<256x128xf32>
    %17 = arith.truncf %16 : vector<256x128xf32> to vector<256x128xbf16>
    %c0_12 = arith.constant 0 : index
    %c0_13 = arith.constant 0 : index
    %18 = vector.load %arg6[%c0_12, %c0_13] : memref<128x128xbf16, #tpu.memory_space<vmem>>, vector<128x128xbf16>
    %cst_14 = arith.constant dense<0.000000e+00> : vector<256x128xf32>
    %19 = tpu.matmul %17, %18, %cst_14 {dimension_numbers = #tpu.dot_dimension_numbers<[1], [0], [0], [1], [0, 0, 1, 1], [], []>} : vector<256x128xbf16>, vector<128x128xbf16>, vector<256x128xf32> -> vector<256x128xf32>
    %c0_15 = arith.constant 0 : index
    %c0_16 = arith.constant 0 : index
    %20 = vector.load %arg7[%c0_15, %c0_16] : memref<1x128xf32, #tpu.memory_space<vmem>>, vector<1x128xf32>
    %21 = vector.broadcast %20 : vector<1x128xf32> to vector<256x128xf32>
    %22 = arith.addf %19, %21 : vector<256x128xf32>
    %23 = arith.truncf %22 : vector<256x128xf32> to vector<256x128xbf16>
    %c0_17 = arith.constant 0 : index
    %c0_18 = arith.constant 0 : index
    %24 = vector.load %arg8[%c0_17, %c0_18] : memref<256x128xbf16, #tpu.memory_space<vmem>>, vector<256x128xbf16>
    tpu.vector_store %arg8[%c0_17, %c0_18], %23 {strides = array<i32>} : memref<256x128xbf16, #tpu.memory_space<vmem>>, vector<256x128xbf16>,
    return
  }
  func.func @transform_0(%arg0: i32) -> (i32, i32) {
    %c0_i32 = arith.constant 0 : i32
    %c0_i32_0 = arith.constant 0 : i32
    return %arg0, %c0_i32 : i32, i32
  }
  func.func @transform_1(%arg0: i32) -> (i32, i32) {
    %c0_i32 = arith.constant 0 : i32
    %c0_i32_0 = arith.constant 0 : i32
    %c0_i32_1 = arith.constant 0 : i32
    return %c0_i32, %c0_i32_0 : i32, i32
  }
  func.func @transform_2(%arg0: i32) -> (i32, i32) {
    %c0_i32 = arith.constant 0 : i32
    %c0_i32_0 = arith.constant 0 : i32
    %c0_i32_1 = arith.constant 0 : i32
    return %c0_i32, %c0_i32_0 : i32, i32
  }
  func.func @transform_3(%arg0: i32) -> (i32, i32) {
    %c0_i32 = arith.constant 0 : i32
    %c0_i32_0 = arith.constant 0 : i32
    %c0_i32_1 = arith.constant 0 : i32
    return %c0_i32, %c0_i32_0 : i32, i32
  }
  func.func @transform_4(%arg0: i32) -> (i32, i32) {
    %c0_i32 = arith.constant 0 : i32
    %c0_i32_0 = arith.constant 0 : i32
    %c0_i32_1 = arith.constant 0 : i32
    return %c0_i32, %c0_i32_0 : i32, i32
  }
  func.func @transform_5(%arg0: i32) -> (i32, i32) {
    %c0_i32 = arith.constant 0 : i32
    %c0_i32_0 = arith.constant 0 : i32
    %c0_i32_1 = arith.constant 0 : i32
    return %c0_i32, %c0_i32_0 : i32, i32
  }
  func.func @transform_6(%arg0: i32) -> (i32, i32) {
    %c0_i32 = arith.constant 0 : i32
    %c0_i32_0 = arith.constant 0 : i32
    %c0_i32_1 = arith.constant 0 : i32
    return %c0_i32, %c0_i32_0 : i32, i32
  }
  func.func @transform_7(%arg0: i32) -> (i32, i32) {
    %c0_i32 = arith.constant 0 : i32
    %c0_i32_0 = arith.constant 0 : i32
    return %arg0, %c0_i32 : i32, i32
  }
}

</mosaic_0001>

<llo_original>
// kernel: hotswap_encoder_mlp.1
$region0: #{hotswap_encoder_mlp.1}
  #allocation0 [shape = 'u32[]', space=smem, size = 0x4, offset = 0x4, fixed_abs, tag = 'smem constant byte address 0x4 - core index']
  #allocation1 [shape = 'u32[144,128]{1,0:T(1,128)}', space=vmem, size = 0x12000, scoped, tag = 'internal scratch']
  %s0 = inlined_call_operand.vmem [shape: f32[512,256], index: 0, kind: input, shape index: {}]
  %s1 = inlined_call_operand.vmem [shape: bf16[256,128], index: 1, kind: input, shape index: {}]
  %s2 = inlined_call_operand.vmem [shape: f32[1,128], index: 2, kind: input, shape index: {}]
  %s3 = inlined_call_operand.vmem [shape: bf16[128,128], index: 3, kind: input, shape index: {}]
  %s4 = inlined_call_operand.vmem [shape: f32[1,128], index: 4, kind: input, shape index: {}]
  %s5 = inlined_call_operand.vmem [shape: bf16[128,128], index: 5, kind: input, shape index: {}]
  %s6 = inlined_call_operand.vmem [shape: f32[1,128], index: 6, kind: input, shape index: {}]
  %s7 = inlined_call_operand.vmem [shape: bf16[512,128], index: 7, kind: output, shape index: {}]
  %s8 = sld [smem:[#allocation0]]
  $region61: #{hotswap_encoder_mlp.1} parent=0
    _
  %s10 = ssub.s32 1, %s8
  %s11 = scalar_select 0, %s10, %s8
  loop: start=0, step=1, limit=4
  $region2: #{hotswap_encoder_mlp.1} parent=0 // loop_pre_header
    _
  $region3: #{hotswap_encoder_mlp.1} parent=0 // loop_header
    %s13 = sphi 0, %s17
    %p14 = scmp.ge.s32.totalorder %s13, 4
    %s23 = sphi 0, %s25
    %s26 = sphi 0, %s23
    %s27 = sphi 0, %s26
    %s43 = sphi 0, %s27
    %s47 = sphi 0, %s47
    %s49 = sphi 0, %s47
    %s50 = sphi 0, %s49
    %s64 = sphi 0, %s50
    %s68 = sphi 0, %s68
    %s70 = sphi 0, %s68
    %s71 = sphi 0, %s70
    %s85 = sphi 0, %s71
    %s89 = sphi 0, %s89
    %s91 = sphi 0, %s89
    %s92 = sphi 0, %s91
    %s106 = sphi 0, %s92
    %s110 = sphi 0, %s110
    %s112 = sphi 0, %s110
    %s113 = sphi 0, %s112
    %s127 = sphi 0, %s113
    %s131 = sphi 0, %s131
    %s133 = sphi 0, %s131
    %s134 = sphi 0, %s133
    %s148 = sphi 0, %s134
    %s152 = sphi 0, %s152
    %s154 = sphi 0, %s152
    %s155 = sphi 0, %s154
    %s169 = sphi 0, %s155
    %s175 = sphi 0, %s177
    %s178 = sphi 0, %s175
    %s179 = sphi 0, %s178
    %s195 = sphi 0, %s179
  $region4: #{hotswap_encoder_mlp.1} parent=0 // loop_header_branch
    %16 = sbr.rel (%p14) target = $region8
  $region5: #{hotswap_encoder_mlp.1} parent=0 // loop_body
    %s18 = ssub.s32 %s13, 1
    %s19 = ssub.s32 %s13, 2
    %s20 = sadd.s32 %s13, 1
    %s21 = ssub.s32 %s13, %s20
    %p22 = scmp.eq.s32.totalorder %s21, 0
    %s24 = sadd.s32 %s23, 1
    %s25 = scalar_select %p22, %s23, %s24
    %p28 = pneg %p22
    %p29 = scmp.eq.s32.totalorder %s13, 1
    %p30 = por %p28, %p29
    %p31 = scmp.ne.s32.totalorder %s23, %s26
    %p32 = scmp.eq.s32.totalorder %s13, 0
    %p33 = por %p31, %p32
    %p34 = scmp.ne.s32.totalorder %s23, %s26
    %p35 = scmp.eq.s32.totalorder %s18, 1
    %p36 = por %p34, %p35
    %p37 = scmp.ne.s32.totalorder %s26, %s27
    %p38 = scmp.eq.s32.totalorder %s18, 0
    %p39 = por %p37, %p38
    %p40 = scmp.ne.s32.totalorder %s26, %s27
    %p41 = scmp.eq.s32.totalorder %s19, 1
    %p42 = por %p40, %p41
    %p44 = scmp.ne.s32.totalorder %s27, %s43
    %p45 = scmp.eq.s32.totalorder %s19, 0
    %p46 = por %p44, %p45
    %s48 = sadd.s32 %s47, 1
    %p51 = scmp.eq.s32.totalorder %s13, 1
    %p52 = scmp.ne.s32.totalorder %s47, %s49
    %p53 = scmp.eq.s32.totalorder %s13, 0
    %p54 = por %p52, %p53
    %p55 = scmp.ne.s32.totalorder %s47, %s49
    %p56 = scmp.eq.s32.totalorder %s18, 1
    %p57 = por %p55, %p56
    %p58 = scmp.ne.s32.totalorder %s49, %s50
    %p59 = scmp.eq.s32.totalorder %s18, 0
    %p60 = por %p58, %p59
    %p61 = scmp.ne.s32.totalorder %s49, %s50
    %p62 = scmp.eq.s32.totalorder %s19, 1
    %p63 = por %p61, %p62
    %p65 = scmp.ne.s32.totalorder %s50, %s64
    %p66 = scmp.eq.s32.totalorder %s19, 0
    %p67 = por %p65, %p66
    %s69 = sadd.s32 %s68, 1
    %p72 = scmp.eq.s32.totalorder %s13, 1
    %p73 = scmp.ne.s32.totalorder %s68, %s70
    %p74 = scmp.eq.s32.totalorder %s13, 0
    %p75 = por %p73, %p74
    %p76 = scmp.ne.s32.totalorder %s68, %s70
    %p77 = scmp.eq.s32.totalorder %s18, 1
    %p78 = por %p76, %p77
    %p79 = scmp.ne.s32.totalorder %s70, %s71
    %p80 = scmp.eq.s32.totalorder %s18, 0
    %p81 = por %p79, %p80
    %p82 = scmp.ne.s32.totalorder %s70, %s71
    %p83 = scmp.eq.s32.totalorder %s19, 1
    %p84 = por %p82, %p83
    %p86 = scmp.ne.s32.totalorder %s71, %s85
    %p87 = scmp.eq.s32.totalorder %s19, 0
    %p88 = por %p86, %p87
    %s90 = sadd.s32 %s89, 1
    %p93 = scmp.eq.s32.totalorder %s13, 1
    %p94 = scmp.ne.s32.totalorder %s89, %s91
    %p95 = scmp.eq.s32.totalorder %s13, 0
    %p96 = por %p94, %p95
    %p97 = scmp.ne.s32.totalorder %s89, %s91
    %p98 = scmp.eq.s32.totalorder %s18, 1
    %p99 = por %p97, %p98
    %p100 = scmp.ne.s32.totalorder %s91, %s92
    %p101 = scmp.eq.s32.totalorder %s18, 0
    %p102 = por %p100, %p101
    %p103 = scmp.ne.s32.totalorder %s91, %s92
    %p104 = scmp.eq.s32.totalorder %s19, 1
    %p105 = por %p103, %p104
    %p107 = scmp.ne.s32.totalorder %s92, %s106
    %p108 = scmp.eq.s32.totalorder %s19, 0
    %p109 = por %p107, %p108
    %s111 = sadd.s32 %s110, 1
    %p114 = scmp.eq.s32.totalorder %s13, 1
    %p115 = scmp.ne.s32.totalorder %s110, %s112
    %p116 = scmp.eq.s32.totalorder %s13, 0
    %p117 = por %p115, %p116
    %p118 = scmp.ne.s32.totalorder %s110, %s112
    %p119 = scmp.eq.s32.totalorder %s18, 1
    %p120 = por %p118, %p119
    %p121 = scmp.ne.s32.totalorder %s112, %s113
    %p122 = scmp.eq.s32.totalorder %s18, 0
    %p123 = por %p121, %p122
    %p124 = scmp.ne.s32.totalorder %s112, %s113
    %p125 = scmp.eq.s32.totalorder %s19, 1
    %p126 = por %p124, %p125
    %p128 = scmp.ne.s32.totalorder %s113, %s127
    %p129 = scmp.eq.s32.totalorder %s19, 0
    %p130 = por %p128, %p129
    %s132 = sadd.s32 %s131, 1
    %p135 = scmp.eq.s32.totalorder %s13, 1
    %p136 = scmp.ne.s32.totalorder %s131, %s133
    %p137 = scmp.eq.s32.totalorder %s13, 0
    %p138 = por %p136, %p137
    %p139 = scmp.ne.s32.totalorder %s131, %s133
    %p140 = scmp.eq.s32.totalorder %s18, 1
    %p141 = por %p139, %p140
    %p142 = scmp.ne.s32.totalorder %s133, %s134
    %p143 = scmp.eq.s32.totalorder %s18, 0
    %p144 = por %p142, %p143
    %p145 = scmp.ne.s32.totalorder %s133, %s134
    %p146 = scmp.eq.s32.totalorder %s19, 1
    %p147 = por %p145, %p146
    %p149 = scmp.ne.s32.totalorder %s134, %s148
    %p150 = scmp.eq.s32.totalorder %s19, 0
    %p151 = por %p149, %p150
    %s153 = sadd.s32 %s152, 1
    %p156 = scmp.eq.s32.totalorder %s13, 1
    %p157 = scmp.ne.s32.totalorder %s152, %s154
    %p158 = scmp.eq.s32.totalorder %s13, 0
    %p159 = por %p157, %p158
    %p160 = scmp.ne.s32.totalorder %s152, %s154
    %p161 = scmp.eq.s32.totalorder %s18, 1
    %p162 = por %p160, %p161
    %p163 = scmp.ne.s32.totalorder %s154, %s155
    %p164 = scmp.eq.s32.totalorder %s18, 0
    %p165 = por %p163, %p164
    %p166 = scmp.ne.s32.totalorder %s154, %s155
    %p167 = scmp.eq.s32.totalorder %s19, 1
    %p168 = por %p166, %p167
    %p170 = scmp.ne.s32.totalorder %s155, %s169
    %p171 = scmp.eq.s32.totalorder %s19, 0
    %p172 = por %p170, %p171
    %s173 = ssub.s32 %s13, %s20
    %p174 = scmp.eq.s32.totalorder %s173, 0
    %s176 = sadd.s32 %s175, 1
    %s177 = scalar_select %p174, %s175, %s176
    %p180 = pneg %p174
    %p181 = scmp.eq.s32.totalorder %s13, 1
    %p182 = por %p180, %p181
    %p183 = scmp.ne.s32.totalorder %s175, %s178
    %p184 = scmp.eq.s32.totalorder %s13, 0
    %p185 = por %p183, %p184
    %p186 = scmp.ne.s32.totalorder %s175, %s178
    %p187 = scmp.eq.s32.totalorder %s18, 1
    %p188 = por %p186, %p187
    %p189 = scmp.ne.s32.totalorder %s178, %s179
    %p190 = scmp.eq.s32.totalorder %s18, 0
    %p191 = por %p189, %p190
    %p192 = scmp.ne.s32.totalorder %s178, %s179
    %p193 = scmp.eq.s32.totalorder %s19, 1
    %p194 = por %p192, %p193
    %p196 = scmp.ne.s32.totalorder %s179, %s195
    %p197 = scmp.eq.s32.totalorder %s19, 0
    %p198 = por %p196, %p197
    %p199 = scmp.le.s32.totalorder 1, %s13
    %p200 = scmp.lt.s32.totalorder %s13, 3
    %p201 = pnand %p199, %p200
    %p202 = pneg %p201
    // Predicated region
    $region9: #{hotswap_encoder_mlp.1} parent=5 // pred_check
      _
    $region10: #{hotswap_encoder_mlp.1} parent=5 // pred_check_branch
      %204 = sbr.rel (%p201) target = $region12
    $region11: #{hotswap_encoder_mlp.1} parent=5 // pred_region
      %s205 = ssub.s32 %s13, 1
      // Predicated region
      $region13: #{hotswap_encoder_mlp.1} parent=11 // pred_check
        %p206 = pneg %p60
      $region14: #{hotswap_encoder_mlp.1} parent=11 // pred_check_branch
        %208 = sbr.rel (%p206) target = $region16
      $region15: #{hotswap_encoder_mlp.1} parent=11 // pred_region
        _
      $region16: #{hotswap_encoder_mlp.1} parent=11 // pred_fallthru
        _
      // Predicated region
      $region17: #{hotswap_encoder_mlp.1} parent=11 // pred_check
        %p209 = pneg %p81
      $region18: #{hotswap_encoder_mlp.1} parent=11 // pred_check_branch
        %211 = sbr.rel (%p209) target = $region20
      $region19: #{hotswap_encoder_mlp.1} parent=11 // pred_region
        _
      $region20: #{hotswap_encoder_mlp.1} parent=11 // pred_fallthru
        _
      // Predicated region
      $region21: #{hotswap_encoder_mlp.1} parent=11 // pred_check
        %p212 = pneg %p102
      $region22: #{hotswap_encoder_mlp.1} parent=11 // pred_check_branch
        %214 = sbr.rel (%p212) target = $region24
      $region23: #{hotswap_encoder_mlp.1} parent=11 // pred_region
        _
      $region24: #{hotswap_encoder_mlp.1} parent=11 // pred_fallthru
        _
      // Predicated region
      $region25: #{hotswap_encoder_mlp.1} parent=11 // pred_check
        %p215 = pneg %p123
      $region26: #{hotswap_encoder_mlp.1} parent=11 // pred_check_branch
        %217 = sbr.rel (%p215) target = $region28
      $region27: #{hotswap_encoder_mlp.1} parent=11 // pred_region
        _
      $region28: #{hotswap_encoder_mlp.1} parent=11 // pred_fallthru
        _
      // Predicated region
      $region29: #{hotswap_encoder_mlp.1} parent=11 // pred_check
        %p218 = pneg %p144
      $region30: #{hotswap_encoder_mlp.1} parent=11 // pred_check_branch
        %220 = sbr.rel (%p218) target = $region32
      $region31: #{hotswap_encoder_mlp.1} parent=11 // pred_region
        _
      $region32: #{hotswap_encoder_mlp.1} parent=11 // pred_fallthru
        _
      // Predicated region
      $region33: #{hotswap_encoder_mlp.1} parent=11 // pred_check
        %p221 = pneg %p165
      $region34: #{hotswap_encoder_mlp.1} parent=11 // pred_check_branch
        %223 = sbr.rel (%p221) target = $region36
      $region35: #{hotswap_encoder_mlp.1} parent=11 // pred_region
        _
      $region36: #{hotswap_encoder_mlp.1} parent=11 // pred_fallthru
        _
    $region12: #{hotswap_encoder_mlp.1} parent=5 // pred_fallthru
      _
    %p224 = scmp.lt.s32.totalorder %s13, 2
    // Predicated region
    $region37: #{hotswap_encoder_mlp.1} parent=5 // pred_check
      %p225 = pneg %p224
    $region38: #{hotswap_encoder_mlp.1} parent=5 // pred_check_branch
      %227 = sbr.rel (%p225) target = $region40
    $region39: #{hotswap_encoder_mlp.1} parent=5 // pred_region
      // Predicated region
      $region41: #{hotswap_encoder_mlp.1} parent=39 // pred_check
        %p228 = pneg %p33
      $region42: #{hotswap_encoder_mlp.1} parent=39 // pred_check_branch
        %230 = sbr.rel (%p228) target = $region44
      $region43: #{hotswap_encoder_mlp.1} parent=39 // pred_region
        %s231 = smul.u32 32, %s13
        %p232 = scmp.lt.s32.totalorder %s231, 63
        %s233 = scalar_select %p232, %s231, 63
        %s234 = smul.addr %s233, 2
        %s235 = smul.addr %s234, 8
        %s236 = scalar_lea.vmem %s0, %s235
        %s237 = smul.u32 32, %s13
      $region44: #{hotswap_encoder_mlp.1} parent=39 // pred_fallthru
        _
    $region40: #{hotswap_encoder_mlp.1} parent=5 // pred_fallthru
      _
    %p238 = scmp.le.s32.totalorder 1, %s13
    %p239 = scmp.lt.s32.totalorder %s13, 3
    %p240 = pnand %p238, %p239
    %p241 = pneg %p240
    // Predicated region
    $region45: #{hotswap_encoder_mlp.1} parent=5 // pred_check
      _
    $region46: #{hotswap_encoder_mlp.1} parent=5 // pred_check_branch
      %243 = sbr.rel (%p240) target = $region48
    $region47: #{hotswap_encoder_mlp.1} parent=5 // pred_region
      %s244 = ssub.s32 %s13, 1
      %s245 = smul.u32 32, %s18
      %p246 = scmp.lt.s32.totalorder %s245, 63
      %s247 = scalar_select %p246, %s245, 63
      %s248 = smul.addr %s247, 2
      %s249 = smul.addr %s248, 8
      %s250 = scalar_lea.vmem %s0, %s249
      %p251 = pneg %p39
      %p252 = pneg %p36
      %p253 = pneg %p60
      %p254 = pneg %p57
      %p255 = pneg %p81
      %p256 = pneg %p78
      %p257 = pneg %p102
      %p258 = pneg %p99
      %p259 = pneg %p123
      %p260 = pneg %p120
      %p261 = pneg %p144
      %p262 = pneg %p141
      %p263 = pneg %p165
      %p264 = pneg %p162
      %p265 = pneg %p191
      %p266 = pneg %p188
      %s267 = smul.u32 32, %s18
      %p268 = scmp.lt.s32.totalorder %s267, 63
      %s269 = scalar_select %p268, %s267, 63
      %s270 = smul.addr %s269, 4
      %s271 = scalar_lea.vmem %s7, %s270
      %s272 = smul.u32 32, %s18
      %p273 = scmp.lt.s32.totalorder %s272, 63
      %s274 = scalar_select %p273, %s272, 63
      %s275 = smul.addr %s274, 2
      %s276 = smul.addr %s275, 8
      %s277 = scalar_lea.vmem %s0, %s276
      %s278 = smul.u32 32, %s18
      %s279 = smul.u32 32, %s18
      %p280 = scmp.lt.s32.totalorder %s279, 63
      %s281 = scalar_select %p280, %s279, 63
      %s282 = smul.addr %s281, 4
      %s283 = scalar_lea.vmem %s7, %s282
      %s284 = smul.u32 32, %s18
      %v286 = vld [vmem:[%s277] sm:$0xff]
      %v287 = vld [vmem:[%s277 + $0x8] sm:$0xff]
      %v288 = vld [vmem:[%s277 + $0x10] sm:$0xff]
      %v289 = vld [vmem:[%s277 + $0x18] sm:$0xff]
      %v290 = vld [vmem:[%s277 + $0x20] sm:$0xff]
      %v291 = vld [vmem:[%s277 + $0x28] sm:$0xff]
      %v292 = vld [vmem:[%s277 + $0x30] sm:$0xff]
      %v293 = vld [vmem:[%s277 + $0x38] sm:$0xff]
      %v294 = vld [vmem:[%s277 + $0x40] sm:$0xff]
      %v295 = vld [vmem:[%s277 + $0x48] sm:$0xff]
      %v296 = vld [vmem:[%s277 + $0x50] sm:$0xff]
      %v297 = vld [vmem:[%s277 + $0x58] sm:$0xff]
      %v298 = vld [vmem:[%s277 + $0x60] sm:$0xff]
      %v299 = vld [vmem:[%s277 + $0x68] sm:$0xff]
      %v300 = vld [vmem:[%s277 + $0x70] sm:$0xff]
      %v301 = vld [vmem:[%s277 + $0x78] sm:$0xff]
      %v302 = vld [vmem:[%s277 + $0x80] sm:$0xff]
      %v303 = vld [vmem:[%s277 + $0x88] sm:$0xff]
      %v304 = vld [vmem:[%s277 + $0x90] sm:$0xff]
      %v305 = vld [vmem:[%s277 + $0x98] sm:$0xff]
      %v306 = vld [vmem:[%s277 + $0xa0] sm:$0xff]
      %v307 = vld [vmem:[%s277 + $0xa8] sm:$0xff]
      %v308 = vld [vmem:[%s277 + $0xb0] sm:$0xff]
      %v309 = vld [vmem:[%s277 + $0xb8] sm:$0xff]
      %v310 = vld [vmem:[%s277 + $0xc0] sm:$0xff]
      %v311 = vld [vmem:[%s277 + $0xc8] sm:$0xff]
      %v312 = vld [vmem:[%s277 + $0xd0] sm:$0xff]
      %v313 = vld [vmem:[%s277 + $0xd8] sm:$0xff]
      %v314 = vld [vmem:[%s277 + $0xe0] sm:$0xff]
      %v315 = vld [vmem:[%s277 + $0xe8] sm:$0xff]
      %v316 = vld [vmem:[%s277 + $0xf0] sm:$0xff]
      %v317 = vld [vmem:[%s277 + $0xf8] sm:$0xff]
      %v318 = vld [vmem:[%s277 + $0x100] sm:$0xff]
      %v319 = vld [vmem:[%s277 + $0x108] sm:$0xff]
      %v320 = vld [vmem:[%s277 + $0x110] sm:$0xff]
      %v321 = vld [vmem:[%s277 + $0x118] sm:$0xff]
      %v322 = vld [vmem:[%s277 + $0x120] sm:$0xff]
      %v323 = vld [vmem:[%s277 + $0x128] sm:$0xff]
      %v324 = vld [vmem:[%s277 + $0x130] sm:$0xff]
      %v325 = vld [vmem:[%s277 + $0x138] sm:$0xff]
      %v326 = vld [vmem:[%s277 + $0x140] sm:$0xff]
      %v327 = vld [vmem:[%s277 + $0x148] sm:$0xff]
      %v328 = vld [vmem:[%s277 + $0x150] sm:$0xff]
      %v329 = vld [vmem:[%s277 + $0x158] sm:$0xff]
      %v330 = vld [vmem:[%s277 + $0x160] sm:$0xff]
      %v331 = vld [vmem:[%s277 + $0x168] sm:$0xff]
      %v332 = vld [vmem:[%s277 + $0x170] sm:$0xff]
      %v333 = vld [vmem:[%s277 + $0x178] sm:$0xff]
      %v334 = vld [vmem:[%s277 + $0x180] sm:$0xff]
      %v335 = vld [vmem:[%s277 + $0x188] sm:$0xff]
      %v336 = vld [vmem:[%s277 + $0x190] sm:$0xff]
      %v337 = vld [vmem:[%s277 + $0x198] sm:$0xff]
      %v338 = vld [vmem:[%s277 + $0x1a0] sm:$0xff]
      %v339 = vld [vmem:[%s277 + $0x1a8] sm:$0xff]
      %v340 = vld [vmem:[%s277 + $0x1b0] sm:$0xff]
      %v341 = vld [vmem:[%s277 + $0x1b8] sm:$0xff]
      %v342 = vld [vmem:[%s277 + $0x1c0] sm:$0xff]
      %v343 = vld [vmem:[%s277 + $0x1c8] sm:$0xff]
      %v344 = vld [vmem:[%s277 + $0x1d0] sm:$0xff]
      %v345 = vld [vmem:[%s277 + $0x1d8] sm:$0xff]
      %v346 = vld [vmem:[%s277 + $0x1e0] sm:$0xff]
      %v347 = vld [vmem:[%s277 + $0x1e8] sm:$0xff]
      %v348 = vld [vmem:[%s277 + $0x1f0] sm:$0xff]
      %v349 = vld [vmem:[%s277 + $0x1f8] sm:$0xff]
      %v350 = vpack.c.bf16 %v288, %v286
      %v351 = vpack.c.bf16 %v289, %v287
      %v352 = vpack.c.bf16 %v292, %v290
      %v353 = vpack.c.bf16 %v293, %v291
      %v354 = vpack.c.bf16 %v296, %v294
      %v355 = vpack.c.bf16 %v297, %v295
      %v356 = vpack.c.bf16 %v300, %v298
      %v357 = vpack.c.bf16 %v301, %v299
      %v358 = vpack.c.bf16 %v304, %v302
      %v359 = vpack.c.bf16 %v305, %v303
      %v360 = vpack.c.bf16 %v308, %v306
      %v361 = vpack.c.bf16 %v309, %v307
      %v362 = vpack.c.bf16 %v312, %v310
      %v363 = vpack.c.bf16 %v313, %v311
      %v364 = vpack.c.bf16 %v316, %v314
      %v365 = vpack.c.bf16 %v317, %v315
      %v366 = vpack.c.bf16 %v320, %v318
      %v367 = vpack.c.bf16 %v321, %v319
      %v368 = vpack.c.bf16 %v324, %v322
      %v369 = vpack.c.bf16 %v325, %v323
      %v370 = vpack.c.bf16 %v328, %v326
      %v371 = vpack.c.bf16 %v329, %v327
      %v372 = vpack.c.bf16 %v332, %v330
      %v373 = vpack.c.bf16 %v333, %v331
      %v374 = vpack.c.bf16 %v336, %v334
      %v375 = vpack.c.bf16 %v337, %v335
      %v376 = vpack.c.bf16 %v340, %v338
      %v377 = vpack.c.bf16 %v341, %v339
      %v378 = vpack.c.bf16 %v344, %v342
      %v379 = vpack.c.bf16 %v345, %v343
      %v380 = vpack.c.bf16 %v348, %v346
      %v381 = vpack.c.bf16 %v349, %v347
      %v382 = vld [vmem:[%s1] sm:$0xf]
      %v383 = vld [vmem:[%s1 + $0x4] sm:$0xf]
      %v384 = vld [vmem:[%s1 + $0x8] sm:$0xf]
      %v385 = vld [vmem:[%s1 + $0xc] sm:$0xf]
      %v386 = vld [vmem:[%s1 + $0x10] sm:$0xf]
      %v387 = vld [vmem:[%s1 + $0x14] sm:$0xf]
      %v388 = vld [vmem:[%s1 + $0x18] sm:$0xf]
      %v389 = vld [vmem:[%s1 + $0x1c] sm:$0xf]
      %v390 = vld [vmem:[%s1 + $0x20] sm:$0xf]
      %v391 = vld [vmem:[%s1 + $0x24] sm:$0xf]
      %v392 = vld [vmem:[%s1 + $0x28] sm:$0xf]
      %v393 = vld [vmem:[%s1 + $0x2c] sm:$0xf]
      %v394 = vld [vmem:[%s1 + $0x30] sm:$0xf]
      %v395 = vld [vmem:[%s1 + $0x34] sm:$0xf]
      %v396 = vld [vmem:[%s1 + $0x38] sm:$0xf]
      %v397 = vld [vmem:[%s1 + $0x3c] sm:$0xf]
      %v398 = vld [vmem:[%s1 + $0x40] sm:$0xf]
      %v399 = vld [vmem:[%s1 + $0x44] sm:$0xf]
      %v400 = vld [vmem:[%s1 + $0x48] sm:$0xf]
      %v401 = vld [vmem:[%s1 + $0x4c] sm:$0xf]
      %v402 = vld [vmem:[%s1 + $0x50] sm:$0xf]
      %v403 = vld [vmem:[%s1 + $0x54] sm:$0xf]
      %v404 = vld [vmem:[%s1 + $0x58] sm:$0xf]
      %v405 = vld [vmem:[%s1 + $0x5c] sm:$0xf]
      %v406 = vld [vmem:[%s1 + $0x60] sm:$0xf]
      %v407 = vld [vmem:[%s1 + $0x64] sm:$0xf]
      %v408 = vld [vmem:[%s1 + $0x68] sm:$0xf]
      %v409 = vld [vmem:[%s1 + $0x6c] sm:$0xf]
      %v410 = vld [vmem:[%s1 + $0x70] sm:$0xf]
      %v411 = vld [vmem:[%s1 + $0x74] sm:$0xf]
      %v412 = vld [vmem:[%s1 + $0x78] sm:$0xf]
      %v413 = vld [vmem:[%s1 + $0x7c] sm:$0xf]
      %v414 = vld [vmem:[%s2] sm:$0x1]
      %v416 = vlaneseq
      %v417 = vshrl.u32 %v416, 7
      %v418 = vsub.s32 0, %v417
      %v419 = vrot.slane %v414, %v418
      %v453 = vunpack.c.l.b16 %v382
      %v454 = vunpack.c.l.b16 %v383
      %v455 = vunpack.c.l.b16 %v384
      %v456 = vunpack.c.l.b16 %v385
      %v457 = vunpack.c.l.b16 %v386
      %v458 = vunpack.c.l.b16 %v387
      %v459 = vunpack.c.l.b16 %v388
      %v460 = vunpack.c.l.b16 %v389
      %v461 = vunpack.c.l.b16 %v390
      %v462 = vunpack.c.l.b16 %v391
      %v463 = vunpack.c.l.b16 %v392
      %v464 = vunpack.c.l.b16 %v393
      %v465 = vunpack.c.l.b16 %v394
      %v466 = vunpack.c.l.b16 %v395
      %v467 = vunpack.c.l.b16 %v396
      %v468 = vunpack.c.l.b16 %v397
      %v469 = vunpack.c.l.b16 %v398
      %v470 = vunpack.c.l.b16 %v399
      %v471 = vunpack.c.l.b16 %v400
      %v472 = vunpack.c.l.b16 %v401
      %v473 = vunpack.c.l.b16 %v402
      %v474 = vunpack.c.l.b16 %v403
      %v475 = vunpack.c.l.b16 %v404
      %v476 = vunpack.c.l.b16 %v405
      %v477 = vunpack.c.l.b16 %v406
      %v478 = vunpack.c.l.b16 %v407
      %v479 = vunpack.c.l.b16 %v408
      %v480 = vunpack.c.l.b16 %v409
      %v481 = vunpack.c.l.b16 %v410
      %v482 = vunpack.c.l.b16 %v411
      %v483 = vunpack.c.l.b16 %v412
      %v484 = vunpack.c.l.b16 %v413
      %v485 = vpack.c.b16 %v454, %v453
      %v486 = vpack.c.b16 %v456, %v455
      %v487 = vpack.c.b16 %v458, %v457
      %v488 = vpack.c.b16 %v460, %v459
      %v489 = vpack.c.b16 %v462, %v461
      %v490 = vpack.c.b16 %v464, %v463
      %v491 = vpack.c.b16 %v466, %v465
      %v492 = vpack.c.b16 %v468, %v467
      %v493 = vpack.c.b16 %v470, %v469
      %v494 = vpack.c.b16 %v472, %v471
      %v495 = vpack.c.b16 %v474, %v473
      %v496 = vpack.c.b16 %v476, %v475
      %v497 = vpack.c.b16 %v478, %v477
      %v498 = vpack.c.b16 %v480, %v479
      %v499 = vpack.c.b16 %v482, %v481
      %v500 = vpack.c.b16 %v484, %v483
      %517 = vmatprep.subr.bf16.mxu0 0
      %518 = vmatpush1.bf16.msra.mxu0 %v492
      %519 = vmatprep.subr.bf16.mxu0 0
      %520 = vmatpush1.bf16.msra.mxu0 %v491
      %521 = vmatprep.subr.bf16.mxu0 0
      %522 = vmatpush1.bf16.msra.mxu0 %v490
      %523 = vmatprep.subr.bf16.mxu0 0
      %524 = vmatpush1.bf16.msra.mxu0 %v489
      %525 = vmatprep.subr.bf16.mxu0 0
      %526 = vmatpush1.bf16.msra.mxu0 %v488
      %527 = vmatprep.subr.bf16.mxu0 0
      %528 = vmatpush1.bf16.msra.mxu0 %v487
      %529 = vmatprep.subr.bf16.mxu0 0
      %530 = vmatpush1.bf16.msra.mxu0 %v486
      %531 = vmatprep.subr.bf16.mxu0 0
      %532 = vmatpush1.bf16.msra.mxu0 %v485
      %533 = vmatprep.subr.bf16.mxu0 0
      %534 = vmatpush2.bf16.msra.mxu0 %v500
      %535 = vmatprep.subr.bf16.mxu0 0
      %536 = vmatpush2.bf16.msra.mxu0 %v499
      %537 = vmatprep.subr.bf16.mxu0 0
      %538 = vmatpush2.bf16.msra.mxu0 %v498
      %539 = vmatprep.subr.bf16.mxu0 0
      %540 = vmatpush2.bf16.msra.mxu0 %v497
      %541 = vmatprep.subr.bf16.mxu0 0
      %542 = vmatpush2.bf16.msra.mxu0 %v496
      %543 = vmatprep.subr.bf16.mxu0 0
      %544 = vmatpush2.bf16.msra.mxu0 %v495
      %545 = vmatprep.subr.bf16.mxu0 0
      %546 = vmatpush2.bf16.msra.mxu0 %v494
      %547 = vmatprep.subr.bf16.mxu0 0
      %548 = vmatpush2.bf16.msra.mxu0 %v493
      %549 = vmatprep.mubr.bf16.mxu0 %v351
      %550 = vmatmul.mubr.bf16.gmra.mxu0 %v350
      %v551 = vpop.f32.mrf.mxu0
      %v552 = vadd.f32 %v419, %v551
      %v553 = vpop.f32.mrf.mxu0
      %v554 = vpop.f32.mrf.mxu0
      %v555 = vadd.f32 %v419, %v554
      %v556 = vpop.f32.mrf.mxu0
      %557 = vmatprep.mubr.bf16.mxu0 %v353
      %558 = vmatmul.mubr.bf16.gmra.mxu0 %v352
      %v559 = vpop.f32.mrf.mxu0
      %v560 = vadd.f32 %v419, %v559
      %v561 = vpop.f32.mrf.mxu0
      %v562 = vpop.f32.mrf.mxu0
      %v563 = vadd.f32 %v419, %v562
      %v564 = vpop.f32.mrf.mxu0
      %565 = vmatprep.mubr.bf16.mxu0 %v355
      %566 = vmatmul.mubr.bf16.gmra.mxu0 %v354
      %v567 = vpop.f32.mrf.mxu0
      %v568 = vadd.f32 %v419, %v567
      %v569 = vpop.f32.mrf.mxu0
      %v570 = vpop.f32.mrf.mxu0
      %v571 = vadd.f32 %v419, %v570
      %v572 = vpop.f32.mrf.mxu0
      %573 = vmatprep.mubr.bf16.mxu0 %v357
      %574 = vmatmul.mubr.bf16.gmra.mxu0 %v356
      %v575 = vpop.f32.mrf.mxu0
      %v576 = vadd.f32 %v419, %v575
      %v577 = vpop.f32.mrf.mxu0
      %v578 = vpop.f32.mrf.mxu0
      %v579 = vadd.f32 %v419, %v578
      %v580 = vpop.f32.mrf.mxu0
      %581 = vmatprep.mubr.bf16.mxu0 %v359
      %582 = vmatmul.mubr.bf16.gmra.mxu0 %v358
      %v583 = vpop.f32.mrf.mxu0
      %v584 = vadd.f32 %v419, %v583
      %v585 = vpop.f32.mrf.mxu0
      %v586 = vpop.f32.mrf.mxu0
      %v587 = vadd.f32 %v419, %v586
      %v588 = vpop.f32.mrf.mxu0
      %589 = vmatprep.mubr.bf16.mxu0 %v361
      %590 = vmatmul.mubr.bf16.gmra.mxu0 %v360
      %v591 = vpop.f32.mrf.mxu0
      %v592 = vadd.f32 %v419, %v591
      %v593 = vpop.f32.mrf.mxu0
      %v594 = vpop.f32.mrf.mxu0
      %v595 = vadd.f32 %v419, %v594
      %v596 = vpop.f32.mrf.mxu0
      %597 = vmatprep.mubr.bf16.mxu0 %v363
      %598 = vmatmul.mubr.bf16.gmra.mxu0 %v362
      %v599 = vpop.f32.mrf.mxu0
      %v600 = vadd.f32 %v419, %v599
      %v601 = vpop.f32.mrf.mxu0
      %v602 = vpop.f32.mrf.mxu0
      %v603 = vadd.f32 %v419, %v602
      %v604 = vpop.f32.mrf.mxu0
      %605 = vmatprep.mubr.bf16.mxu0 %v365
      %606 = vmatmul.mubr.bf16.gmra.mxu0 %v364
      %v607 = vpop.f32.mrf.mxu0
      %v608 = vadd.f32 %v419, %v607
      %v609 = vpop.f32.mrf.mxu0
      %v610 = vpop.f32.mrf.mxu0
      %v611 = vadd.f32 %v419, %v610
      %v612 = vpop.f32.mrf.mxu0
      %613 = vmatprep.mubr.bf16.mxu0 %v367
      %614 = vmatmul.mubr.bf16.gmra.mxu0 %v366
      %v615 = vpop.f32.mrf.mxu0
      %v616 = vadd.f32 %v419, %v615
      %v617 = vpop.f32.mrf.mxu0
      %v618 = vpop.f32.mrf.mxu0
      %v619 = vadd.f32 %v419, %v618
      %v620 = vpop.f32.mrf.mxu0
      %621 = vmatprep.mubr.bf16.mxu0 %v369
      %622 = vmatmul.mubr.bf16.gmra.mxu0 %v368
      %v623 = vpop.f32.mrf.mxu0
      %v624 = vadd.f32 %v419, %v623
      %v625 = vpop.f32.mrf.mxu0
      %v626 = vpop.f32.mrf.mxu0
      %v627 = vadd.f32 %v419, %v626
      %v628 = vpop.f32.mrf.mxu0
      %629 = vmatprep.mubr.bf16.mxu0 %v371
      %630 = vmatmul.mubr.bf16.gmra.mxu0 %v370
      %v631 = vpop.f32.mrf.mxu0
      %v632 = vadd.f32 %v419, %v631
      %v633 = vpop.f32.mrf.mxu0
      %v634 = vpop.f32.mrf.mxu0
      %v635 = vadd.f32 %v419, %v634
      %v636 = vpop.f32.mrf.mxu0
      %637 = vmatprep.mubr.bf16.mxu0 %v373
      %638 = vmatmul.mubr.bf16.gmra.mxu0 %v372
      %v639 = vpop.f32.mrf.mxu0
      %v640 = vadd.f32 %v419, %v639
      %v641 = vpop.f32.mrf.mxu0
      %v642 = vpop.f32.mrf.mxu0
      %v643 = vadd.f32 %v419, %v642
      %v644 = vpop.f32.mrf.mxu0
      %645 = vmatprep.mubr.bf16.mxu0 %v375
      %646 = vmatmul.mubr.bf16.gmra.mxu0 %v374
      %v647 = vpop.f32.mrf.mxu0
      %v648 = vadd.f32 %v419, %v647
      %v649 = vpop.f32.mrf.mxu0
      %v650 = vpop.f32.mrf.mxu0
      %v651 = vadd.f32 %v419, %v650
      %v652 = vpop.f32.mrf.mxu0
      %653 = vmatprep.mubr.bf16.mxu0 %v377
      %654 = vmatmul.mubr.bf16.gmra.mxu0 %v376
      %v655 = vpop.f32.mrf.mxu0
      %v656 = vadd.f32 %v419, %v655
      %v657 = vpop.f32.mrf.mxu0
      %v658 = vpop.f32.mrf.mxu0
      %v659 = vadd.f32 %v419, %v658
      %v660 = vpop.f32.mrf.mxu0
      %661 = vmatprep.mubr.bf16.mxu0 %v379
      %662 = vmatmul.mubr.bf16.gmra.mxu0 %v378
      %v663 = vpop.f32.mrf.mxu0
      %v664 = vadd.f32 %v419, %v663
      %v665 = vpop.f32.mrf.mxu0
      %v666 = vpop.f32.mrf.mxu0
      %v667 = vadd.f32 %v419, %v666
      %v668 = vpop.f32.mrf.mxu0
      %669 = vmatprep.mubr.bf16.mxu0 %v381
      %670 = vmatmul.mubr.bf16.gmra.mxu0 %v380
      %v671 = vpop.f32.mrf.mxu0
      %v672 = vadd.f32 %v419, %v671
      %v673 = vpop.f32.mrf.mxu0
      %v674 = vpop.f32.mrf.mxu0
      %v675 = vadd.f32 %v419, %v674
      %v676 = vpop.f32.mrf.mxu0
      %677 = vdwg.mxu0
      %v678 = vmax.f32 %v552, 0.0
      %v679 = vmax.f32 %v555, 0.0
      %v680 = vmax.f32 %v560, 0.0
      %v681 = vmax.f32 %v563, 0.0
      %v682 = vmax.f32 %v568, 0.0
      %v683 = vmax.f32 %v571, 0.0
      %v684 = vmax.f32 %v576, 0.0
      %v685 = vmax.f32 %v579, 0.0
      %v686 = vmax.f32 %v584, 0.0
      %v687 = vmax.f32 %v587, 0.0
      %v688 = vmax.f32 %v592, 0.0
      %v689 = vmax.f32 %v595, 0.0
      %v690 = vmax.f32 %v600, 0.0
      %v691 = vmax.f32 %v603, 0.0
      %v692 = vmax.f32 %v608, 0.0
      %v693 = vmax.f32 %v611, 0.0
      %v694 = vmax.f32 %v616, 0.0
      %v695 = vmax.f32 %v619, 0.0
      %v696 = vmax.f32 %v624, 0.0
      %v697 = vmax.f32 %v627, 0.0
      %v698 = vmax.f32 %v632, 0.0
      %v699 = vmax.f32 %v635, 0.0
      %v700 = vmax.f32 %v640, 0.0
      %v701 = vmax.f32 %v643, 0.0
      %v702 = vmax.f32 %v648, 0.0
      %v703 = vmax.f32 %v651, 0.0
      %v704 = vmax.f32 %v656, 0.0
      %v705 = vmax.f32 %v659, 0.0
      %v706 = vmax.f32 %v664, 0.0
      %v707 = vmax.f32 %v667, 0.0
      %v708 = vmax.f32 %v672, 0.0
      %v709 = vmax.f32 %v675, 0.0
      %v710 = vpack.c.bf16 %v679, %v678
      %v711 = vpack.c.bf16 %v681, %v680
      %v712 = vpack.c.bf16 %v683, %v682
      %v713 = vpack.c.bf16 %v685, %v684
      %v714 = vpack.c.bf16 %v687, %v686
      %v715 = vpack.c.bf16 %v689, %v688
      %v716 = vpack.c.bf16 %v691, %v690
      %v717 = vpack.c.bf16 %v693, %v692
      %v718 = vpack.c.bf16 %v695, %v694
      %v719 = vpack.c.bf16 %v697, %v696
      %v720 = vpack.c.bf16 %v699, %v698
      %v721 = vpack.c.bf16 %v701, %v700
      %v722 = vpack.c.bf16 %v703, %v702
      %v723 = vpack.c.bf16 %v705, %v704
      %v724 = vpack.c.bf16 %v707, %v706
      %v725 = vpack.c.bf16 %v709, %v708
      %v726 = vld [vmem:[%s3] sm:$0xf]
      %v727 = vld [vmem:[%s3 + $0x4] sm:$0xf]
      %v728 = vld [vmem:[%s3 + $0x8] sm:$0xf]
      %v729 = vld [vmem:[%s3 + $0xc] sm:$0xf]
      %v730 = vld [vmem:[%s3 + $0x10] sm:$0xf]
      %v731 = vld [vmem:[%s3 + $0x14] sm:$0xf]
      %v732 = vld [vmem:[%s3 + $0x18] sm:$0xf]
      %v733 = vld [vmem:[%s3 + $0x1c] sm:$0xf]
      %v734 = vld [vmem:[%s3 + $0x20] sm:$0xf]
      %v735 = vld [vmem:[%s3 + $0x24] sm:$0xf]
      %v736 = vld [vmem:[%s3 + $0x28] sm:$0xf]
      %v737 = vld [vmem:[%s3 + $0x2c] sm:$0xf]
      %v738 = vld [vmem:[%s3 + $0x30] sm:$0xf]
      %v739 = vld [vmem:[%s3 + $0x34] sm:$0xf]
      %v740 = vld [vmem:[%s3 + $0x38] sm:$0xf]
      %v741 = vld [vmem:[%s3 + $0x3c] sm:$0xf]
      %v742 = vld [vmem:[%s4] sm:$0x1]
      %v744 = vlaneseq
      %v745 = vshrl.u32 %v744, 7
      %v746 = vsub.s32 0, %v745
      %v747 = vrot.slane %v742, %v746
      %v765 = vunpack.c.l.b16 %v726
      %v766 = vunpack.c.l.b16 %v727
      %v767 = vunpack.c.l.b16 %v728
      %v768 = vunpack.c.l.b16 %v729
      %v769 = vunpack.c.l.b16 %v730
      %v770 = vunpack.c.l.b16 %v731
      %v771 = vunpack.c.l.b16 %v732
      %v772 = vunpack.c.l.b16 %v733
      %v773 = vunpack.c.l.b16 %v734
      %v774 = vunpack.c.l.b16 %v735
      %v775 = vunpack.c.l.b16 %v736
      %v776 = vunpack.c.l.b16 %v737
      %v777 = vunpack.c.l.b16 %v738
      %v778 = vunpack.c.l.b16 %v739
      %v779 = vunpack.c.l.b16 %v740
      %v780 = vunpack.c.l.b16 %v741
      %v781 = vpack.c.b16 %v766, %v765
      %v782 = vpack.c.b16 %v768, %v767
      %v783 = vpack.c.b16 %v770, %v769
      %v784 = vpack.c.b16 %v772, %v771
      %v785 = vpack.c.b16 %v774, %v773
      %v786 = vpack.c.b16 %v776, %v775
      %v787 = vpack.c.b16 %v778, %v777
      %v788 = vpack.c.b16 %v780, %v779
      %797 = vmatprep.subr.bf16.mxu0 0
      %798 = vmatpush1.bf16.msra.mxu0 %v788
      %799 = vmatprep.subr.bf16.mxu0 0
      %800 = vmatpush1.bf16.msra.mxu0 %v787
      %801 = vmatprep.subr.bf16.mxu0 0
      %802 = vmatpush1.bf16.msra.mxu0 %v786
      %803 = vmatprep.subr.bf16.mxu0 0
      %804 = vmatpush1.bf16.msra.mxu0 %v785
      %805 = vmatprep.subr.bf16.mxu0 0
      %806 = vmatpush1.bf16.msra.mxu0 %v784
      %807 = vmatprep.subr.bf16.mxu0 0
      %808 = vmatpush1.bf16.msra.mxu0 %v783
      %809 = vmatprep.subr.bf16.mxu0 0
      %810 = vmatpush1.bf16.msra.mxu0 %v782
      %811 = vmatprep.subr.bf16.mxu0 0
      %812 = vmatpush1.bf16.msra.mxu0 %v781
      %813 = vmatprep.subr.bf16.mxu0 0
      %814 = vmatpush2.bf16.msra.mxu0 0
      %815 = vmatprep.subr.bf16.mxu0 0
      %816 = vmatpush2.bf16.msra.mxu0 0
      %817 = vmatprep.subr.bf16.mxu0 0
      %818 = vmatpush2.bf16.msra.mxu0 0
      %819 = vmatprep.subr.bf16.mxu0 0
      %820 = vmatpush2.bf16.msra.mxu0 0
      %821 = vmatprep.subr.bf16.mxu0 0
      %822 = vmatpush2.bf16.msra.mxu0 0
      %823 = vmatprep.subr.bf16.mxu0 0
      %824 = vmatpush2.bf16.msra.mxu0 0
      %825 = vmatprep.subr.bf16.mxu0 0
      %826 = vmatpush2.bf16.msra.mxu0 0
      %827 = vmatprep.subr.bf16.mxu0 0
      %828 = vmatpush2.bf16.msra.mxu0 0
      %829 = vmatprep.mubr.bf16.mxu0 0
      %830 = vmatmul.mubr.bf16.gmra.mxu0 %v710
      %v831 = vpop.f32.mrf.mxu0
      %v832 = vadd.f32 %v747, %v831
      %v833 = vpop.f32.mrf.mxu0
      %v834 = vpop.f32.mrf.mxu0
      %v835 = vadd.f32 %v747, %v834
      %v836 = vpop.f32.mrf.mxu0
      %837 = vmatprep.mubr.bf16.mxu0 0
      %838 = vmatmul.mubr.bf16.gmra.mxu0 %v711
      %v839 = vpop.f32.mrf.mxu0
      %v840 = vadd.f32 %v747, %v839
      %v841 = vpop.f32.mrf.mxu0
      %v842 = vpop.f32.mrf.mxu0
      %v843 = vadd.f32 %v747, %v842
      %v844 = vpop.f32.mrf.mxu0
      %845 = vmatprep.mubr.bf16.mxu0 0
      %846 = vmatmul.mubr.bf16.gmra.mxu0 %v712
      %v847 = vpop.f32.mrf.mxu0
      %v848 = vadd.f32 %v747, %v847
      %v849 = vpop.f32.mrf.mxu0
      %v850 = vpop.f32.mrf.mxu0
      %v851 = vadd.f32 %v747, %v850
      %v852 = vpop.f32.mrf.mxu0
      %853 = vmatprep.mubr.bf16.mxu0 0
      %854 = vmatmul.mubr.bf16.gmra.mxu0 %v713
      %v855 = vpop.f32.mrf.mxu0
      %v856 = vadd.f32 %v747, %v855
      %v857 = vpop.f32.mrf.mxu0
      %v858 = vpop.f32.mrf.mxu0
      %v859 = vadd.f32 %v747, %v858
      %v860 = vpop.f32.mrf.mxu0
      %861 = vmatprep.mubr.bf16.mxu0 0
      %862 = vmatmul.mubr.bf16.gmra.mxu0 %v714
      %v863 = vpop.f32.mrf.mxu0
      %v864 = vadd.f32 %v747, %v863
      %v865 = vpop.f32.mrf.mxu0
      %v866 = vpop.f32.mrf.mxu0
      %v867 = vadd.f32 %v747, %v866
      %v868 = vpop.f32.mrf.mxu0
      %869 = vmatprep.mubr.bf16.mxu0 0
      %870 = vmatmul.mubr.bf16.gmra.mxu0 %v715
      %v871 = vpop.f32.mrf.mxu0
      %v872 = vadd.f32 %v747, %v871
      %v873 = vpop.f32.mrf.mxu0
      %v874 = vpop.f32.mrf.mxu0
      %v875 = vadd.f32 %v747, %v874
      %v876 = vpop.f32.mrf.mxu0
      %877 = vmatprep.mubr.bf16.mxu0 0
      %878 = vmatmul.mubr.bf16.gmra.mxu0 %v716
      %v879 = vpop.f32.mrf.mxu0
      %v880 = vadd.f32 %v747, %v879
      %v881 = vpop.f32.mrf.mxu0
      %v882 = vpop.f32.mrf.mxu0
      %v883 = vadd.f32 %v747, %v882
      %v884 = vpop.f32.mrf.mxu0
      %885 = vmatprep.mubr.bf16.mxu0 0
      %886 = vmatmul.mubr.bf16.gmra.mxu0 %v717
      %v887 = vpop.f32.mrf.mxu0
      %v888 = vadd.f32 %v747, %v887
      %v889 = vpop.f32.mrf.mxu0
      %v890 = vpop.f32.mrf.mxu0
      %v891 = vadd.f32 %v747, %v890
      %v892 = vpop.f32.mrf.mxu0
      %893 = vmatprep.mubr.bf16.mxu0 0
      %894 = vmatmul.mubr.bf16.gmra.mxu0 %v718
      %v895 = vpop.f32.mrf.mxu0
      %v896 = vadd.f32 %v747, %v895
      %v897 = vpop.f32.mrf.mxu0
      %v898 = vpop.f32.mrf.mxu0
      %v899 = vadd.f32 %v747, %v898
      %v900 = vpop.f32.mrf.mxu0
      %901 = vmatprep.mubr.bf16.mxu0 0
      %902 = vmatmul.mubr.bf16.gmra.mxu0 %v719
      %v903 = vpop.f32.mrf.mxu0
      %v904 = vadd.f32 %v747, %v903
      %v905 = vpop.f32.mrf.mxu0
      %v906 = vpop.f32.mrf.mxu0
      %v907 = vadd.f32 %v747, %v906
      %v908 = vpop.f32.mrf.mxu0
      %909 = vmatprep.mubr.bf16.mxu0 0
      %910 = vmatmul.mubr.bf16.gmra.mxu0 %v720
      %v911 = vpop.f32.mrf.mxu0
      %v912 = vadd.f32 %v747, %v911
      %v913 = vpop.f32.mrf.mxu0
      %v914 = vpop.f32.mrf.mxu0
      %v915 = vadd.f32 %v747, %v914
      %v916 = vpop.f32.mrf.mxu0
      %917 = vmatprep.mubr.bf16.mxu0 0
      %918 = vmatmul.mubr.bf16.gmra.mxu0 %v721
      %v919 = vpop.f32.mrf.mxu0
      %v920 = vadd.f32 %v747, %v919
      %v921 = vpop.f32.mrf.mxu0
      %v922 = vpop.f32.mrf.mxu0
      %v923 = vadd.f32 %v747, %v922
      %v924 = vpop.f32.mrf.mxu0
      %925 = vmatprep.mubr.bf16.mxu0 0
      %926 = vmatmul.mubr.bf16.gmra.mxu0 %v722
      %v927 = vpop.f32.mrf.mxu0
      %v928 = vadd.f32 %v747, %v927
      %v929 = vpop.f32.mrf.mxu0
      %v930 = vpop.f32.mrf.mxu0
      %v931 = vadd.f32 %v747, %v930
      %v932 = vpop.f32.mrf.mxu0
      %933 = vmatprep.mubr.bf16.mxu0 0
      %934 = vmatmul.mubr.bf16.gmra.mxu0 %v723
      %v935 = vpop.f32.mrf.mxu0
      %v936 = vadd.f32 %v747, %v935
      %v937 = vpop.f32.mrf.mxu0
      %v938 = vpop.f32.mrf.mxu0
      %v939 = vadd.f32 %v747, %v938
      %v940 = vpop.f32.mrf.mxu0
      %941 = vmatprep.mubr.bf16.mxu0 0
      %942 = vmatmul.mubr.bf16.gmra.mxu0 %v724
      %v943 = vpop.f32.mrf.mxu0
      %v944 = vadd.f32 %v747, %v943
      %v945 = vpop.f32.mrf.mxu0
      %v946 = vpop.f32.mrf.mxu0
      %v947 = vadd.f32 %v747, %v946
      %v948 = vpop.f32.mrf.mxu0
      %949 = vmatprep.mubr.bf16.mxu0 0
      %950 = vmatmul.mubr.bf16.gmra.mxu0 %v725
      %v951 = vpop.f32.mrf.mxu0
      %v952 = vadd.f32 %v747, %v951
      %v953 = vpop.f32.mrf.mxu0
      %v954 = vpop.f32.mrf.mxu0
      %v955 = vadd.f32 %v747, %v954
      %v956 = vpop.f32.mrf.mxu0
      %957 = vdwg.mxu0
      %v958 = vmax.f32 %v832, 0.0
      %v959 = vmax.f32 %v835, 0.0
      %v960 = vmax.f32 %v840, 0.0
      %v961 = vmax.f32 %v843, 0.0
      %v962 = vmax.f32 %v848, 0.0
      %v963 = vmax.f32 %v851, 0.0
      %v964 = vmax.f32 %v856, 0.0
      %v965 = vmax.f32 %v859, 0.0
      %v966 = vmax.f32 %v864, 0.0
      %v967 = vmax.f32 %v867, 0.0
      %v968 = vmax.f32 %v872, 0.0
      %v969 = vmax.f32 %v875, 0.0
      %v970 = vmax.f32 %v880, 0.0
      %v971 = vmax.f32 %v883, 0.0
      %v972 = vmax.f32 %v888, 0.0
      %v973 = vmax.f32 %v891, 0.0
      %v974 = vmax.f32 %v896, 0.0
      %v975 = vmax.f32 %v899, 0.0
      %v976 = vmax.f32 %v904, 0.0
      %v977 = vmax.f32 %v907, 0.0
      %v978 = vmax.f32 %v912, 0.0
      %v979 = vmax.f32 %v915, 0.0
      %v980 = vmax.f32 %v920, 0.0
      %v981 = vmax.f32 %v923, 0.0
      %v982 = vmax.f32 %v928, 0.0
      %v983 = vmax.f32 %v931, 0.0
      %v984 = vmax.f32 %v936, 0.0
      %v985 = vmax.f32 %v939, 0.0
      %v986 = vmax.f32 %v944, 0.0
      %v987 = vmax.f32 %v947, 0.0
      %v988 = vmax.f32 %v952, 0.0
      %v989 = vmax.f32 %v955, 0.0
      %v990 = vpack.c.bf16 %v959, %v958
      %v991 = vpack.c.bf16 %v961, %v960
      %v992 = vpack.c.bf16 %v963, %v962
      %v993 = vpack.c.bf16 %v965, %v964
      %v994 = vpack.c.bf16 %v967, %v966
      %v995 = vpack.c.bf16 %v969, %v968
      %v996 = vpack.c.bf16 %v971, %v970
      %v997 = vpack.c.bf16 %v973, %v972
      %v998 = vpack.c.bf16 %v975, %v974
      %v999 = vpack.c.bf16 %v977, %v976
      %v1000 = vpack.c.bf16 %v979, %v978
      %v1001 = vpack.c.bf16 %v981, %v980
      %v1002 = vpack.c.bf16 %v983, %v982
      %v1003 = vpack.c.bf16 %v985, %v984
      %v1004 = vpack.c.bf16 %v987, %v986
      %v1005 = vpack.c.bf16 %v989, %v988
      %v1006 = vld [vmem:[%s5] sm:$0xf]
      %v1007 = vld [vmem:[%s5 + $0x4] sm:$0xf]
      %v1008 = vld [vmem:[%s5 + $0x8] sm:$0xf]
      %v1009 = vld [vmem:[%s5 + $0xc] sm:$0xf]
      %v1010 = vld [vmem:[%s5 + $0x10] sm:$0xf]
      %v1011 = vld [vmem:[%s5 + $0x14] sm:$0xf]
      %v1012 = vld [vmem:[%s5 + $0x18] sm:$0xf]
      %v1013 = vld [vmem:[%s5 + $0x1c] sm:$0xf]
      %v1014 = vld [vmem:[%s5 + $0x20] sm:$0xf]
      %v1015 = vld [vmem:[%s5 + $0x24] sm:$0xf]
      %v1016 = vld [vmem:[%s5 + $0x28] sm:$0xf]
      %v1017 = vld [vmem:[%s5 + $0x2c] sm:$0xf]
      %v1018 = vld [vmem:[%s5 + $0x30] sm:$0xf]
      %v1019 = vld [vmem:[%s5 + $0x34] sm:$0xf]
      %v1020 = vld [vmem:[%s5 + $0x38] sm:$0xf]
      %v1021 = vld [vmem:[%s5 + $0x3c] sm:$0xf]
      %v1022 = vld [vmem:[%s6] sm:$0x1]
      %v1024 = vlaneseq
      %v1025 = vshrl.u32 %v1024, 7
      %v1026 = vsub.s32 0, %v1025
      %v1027 = vrot.slane %v1022, %v1026
      %v1045 = vunpack.c.l.b16 %v1006
      %v1046 = vunpack.c.l.b16 %v1007
      %v1047 = vunpack.c.l.b16 %v1008
      %v1048 = vunpack.c.l.b16 %v1009
      %v1049 = vunpack.c.l.b16 %v1010
      %v1050 = vunpack.c.l.b16 %v1011
      %v1051 = vunpack.c.l.b16 %v1012
      %v1052 = vunpack.c.l.b16 %v1013
      %v1053 = vunpack.c.l.b16 %v1014
      %v1054 = vunpack.c.l.b16 %v1015
      %v1055 = vunpack.c.l.b16 %v1016
      %v1056 = vunpack.c.l.b16 %v1017
      %v1057 = vunpack.c.l.b16 %v1018
      %v1058 = vunpack.c.l.b16 %v1019
      %v1059 = vunpack.c.l.b16 %v1020
      %v1060 = vunpack.c.l.b16 %v1021
      %v1061 = vpack.c.b16 %v1046, %v1045
      %v1062 = vpack.c.b16 %v1048, %v1047
      %v1063 = vpack.c.b16 %v1050, %v1049
      %v1064 = vpack.c.b16 %v1052, %v1051
      %v1065 = vpack.c.b16 %v1054, %v1053
      %v1066 = vpack.c.b16 %v1056, %v1055
      %v1067 = vpack.c.b16 %v1058, %v1057
      %v1068 = vpack.c.b16 %v1060, %v1059
      %1077 = vmatprep.subr.bf16.mxu0 0
      %1078 = vmatpush1.bf16.msra.mxu0 %v1068
      %1079 = vmatprep.subr.bf16.mxu0 0
      %1080 = vmatpush1.bf16.msra.mxu0 %v1067
      %1081 = vmatprep.subr.bf16.mxu0 0
      %1082 = vmatpush1.bf16.msra.mxu0 %v1066
      %1083 = vmatprep.subr.bf16.mxu0 0
      %1084 = vmatpush1.bf16.msra.mxu0 %v1065
      %1085 = vmatprep.subr.bf16.mxu0 0
      %1086 = vmatpush1.bf16.msra.mxu0 %v1064
      %1087 = vmatprep.subr.bf16.mxu0 0
      %1088 = vmatpush1.bf16.msra.mxu0 %v1063
      %1089 = vmatprep.subr.bf16.mxu0 0
      %1090 = vmatpush1.bf16.msra.mxu0 %v1062
      %1091 = vmatprep.subr.bf16.mxu0 0
      %1092 = vmatpush1.bf16.msra.mxu0 %v1061
      %1093 = vmatprep.subr.bf16.mxu0 0
      %1094 = vmatpush2.bf16.msra.mxu0 0
      %1095 = vmatprep.subr.bf16.mxu0 0
      %1096 = vmatpush2.bf16.msra.mxu0 0
      %1097 = vmatprep.subr.bf16.mxu0 0
      %1098 = vmatpush2.bf16.msra.mxu0 0
      %1099 = vmatprep.subr.bf16.mxu0 0
      %1100 = vmatpush2.bf16.msra.mxu0 0
      %1101 = vmatprep.subr.bf16.mxu0 0
      %1102 = vmatpush2.bf16.msra.mxu0 0
      %1103 = vmatprep.subr.bf16.mxu0 0
      %1104 = vmatpush2.bf16.msra.mxu0 0
      %1105 = vmatprep.subr.bf16.mxu0 0
      %1106 = vmatpush2.bf16.msra.mxu0 0
      %1107 = vmatprep.subr.bf16.mxu0 0
      %1108 = vmatpush2.bf16.msra.mxu0 0
      %1109 = vmatprep.mubr.bf16.mxu0 0
      %1110 = vmatmul.mubr.bf16.gmra.mxu0 %v990
      %v1111 = vpop.f32.mrf.mxu0
      %v1112 = vadd.f32 %v1027, %v1111
      %v1113 = vpop.f32.mrf.mxu0
      %v1114 = vpop.f32.mrf.mxu0
      %v1115 = vadd.f32 %v1027, %v1114
      %v1116 = vpop.f32.mrf.mxu0
      %1117 = vmatprep.mubr.bf16.mxu0 0
      %1118 = vmatmul.mubr.bf16.gmra.mxu0 %v991
      %v1119 = vpop.f32.mrf.mxu0
      %v1120 = vadd.f32 %v1027, %v1119
      %v1121 = vpop.f32.mrf.mxu0
      %v1122 = vpop.f32.mrf.mxu0
      %v1123 = vadd.f32 %v1027, %v1122
      %v1124 = vpop.f32.mrf.mxu0
      %1125 = vmatprep.mubr.bf16.mxu0 0
      %1126 = vmatmul.mubr.bf16.gmra.mxu0 %v992
      %v1127 = vpop.f32.mrf.mxu0
      %v1128 = vadd.f32 %v1027, %v1127
      %v1129 = vpop.f32.mrf.mxu0
      %v1130 = vpop.f32.mrf.mxu0
      %v1131 = vadd.f32 %v1027, %v1130
      %v1132 = vpop.f32.mrf.mxu0
      %1133 = vmatprep.mubr.bf16.mxu0 0
      %1134 = vmatmul.mubr.bf16.gmra.mxu0 %v993
      %v1135 = vpop.f32.mrf.mxu0
      %v1136 = vadd.f32 %v1027, %v1135
      %v1137 = vpop.f32.mrf.mxu0
      %v1138 = vpop.f32.mrf.mxu0
      %v1139 = vadd.f32 %v1027, %v1138
      %v1140 = vpop.f32.mrf.mxu0
      %1141 = vmatprep.mubr.bf16.mxu0 0
      %1142 = vmatmul.mubr.bf16.gmra.mxu0 %v994
      %v1143 = vpop.f32.mrf.mxu0
      %v1144 = vadd.f32 %v1027, %v1143
      %v1145 = vpop.f32.mrf.mxu0
      %v1146 = vpop.f32.mrf.mxu0
      %v1147 = vadd.f32 %v1027, %v1146
      %v1148 = vpop.f32.mrf.mxu0
      %1149 = vmatprep.mubr.bf16.mxu0 0
      %1150 = vmatmul.mubr.bf16.gmra.mxu0 %v995
      %v1151 = vpop.f32.mrf.mxu0
      %v1152 = vadd.f32 %v1027, %v1151
      %v1153 = vpop.f32.mrf.mxu0
      %v1154 = vpop.f32.mrf.mxu0
      %v1155 = vadd.f32 %v1027, %v1154
      %v1156 = vpop.f32.mrf.mxu0
      %1157 = vmatprep.mubr.bf16.mxu0 0
      %1158 = vmatmul.mubr.bf16.gmra.mxu0 %v996
      %v1159 = vpop.f32.mrf.mxu0
      %v1160 = vadd.f32 %v1027, %v1159
      %v1161 = vpop.f32.mrf.mxu0
      %v1162 = vpop.f32.mrf.mxu0
      %v1163 = vadd.f32 %v1027, %v1162
      %v1164 = vpop.f32.mrf.mxu0
      %1165 = vmatprep.mubr.bf16.mxu0 0
      %1166 = vmatmul.mubr.bf16.gmra.mxu0 %v997
      %v1167 = vpop.f32.mrf.mxu0
      %v1168 = vadd.f32 %v1027, %v1167
      %v1169 = vpop.f32.mrf.mxu0
      %v1170 = vpop.f32.mrf.mxu0
      %v1171 = vadd.f32 %v1027, %v1170
      %v1172 = vpop.f32.mrf.mxu0
      %1173 = vmatprep.mubr.bf16.mxu0 0
      %1174 = vmatmul.mubr.bf16.gmra.mxu0 %v998
      %v1175 = vpop.f32.mrf.mxu0
      %v1176 = vadd.f32 %v1027, %v1175
      %v1177 = vpop.f32.mrf.mxu0
      %v1178 = vpop.f32.mrf.mxu0
      %v1179 = vadd.f32 %v1027, %v1178
      %v1180 = vpop.f32.mrf.mxu0
      %1181 = vmatprep.mubr.bf16.mxu0 0
      %1182 = vmatmul.mubr.bf16.gmra.mxu0 %v999
      %v1183 = vpop.f32.mrf.mxu0
      %v1184 = vadd.f32 %v1027, %v1183
      %v1185 = vpop.f32.mrf.mxu0
      %v1186 = vpop.f32.mrf.mxu0
      %v1187 = vadd.f32 %v1027, %v1186
      %v1188 = vpop.f32.mrf.mxu0
      %1189 = vmatprep.mubr.bf16.mxu0 0
      %1190 = vmatmul.mubr.bf16.gmra.mxu0 %v1000
      %v1191 = vpop.f32.mrf.mxu0
      %v1192 = vadd.f32 %v1027, %v1191
      %v1193 = vpop.f32.mrf.mxu0
      %v1194 = vpop.f32.mrf.mxu0
      %v1195 = vadd.f32 %v1027, %v1194
      %v1196 = vpop.f32.mrf.mxu0
      %1197 = vmatprep.mubr.bf16.mxu0 0
      %1198 = vmatmul.mubr.bf16.gmra.mxu0 %v1001
      %v1199 = vpop.f32.mrf.mxu0
      %v1200 = vadd.f32 %v1027, %v1199
      %v1201 = vpop.f32.mrf.mxu0
      %v1202 = vpop.f32.mrf.mxu0
      %v1203 = vadd.f32 %v1027, %v1202
      %v1204 = vpop.f32.mrf.mxu0
      %1205 = vmatprep.mubr.bf16.mxu0 0
      %1206 = vmatmul.mubr.bf16.gmra.mxu0 %v1002
      %v1207 = vpop.f32.mrf.mxu0
      %v1208 = vadd.f32 %v1027, %v1207
      %v1209 = vpop.f32.mrf.mxu0
      %v1210 = vpop.f32.mrf.mxu0
      %v1211 = vadd.f32 %v1027, %v1210
      %v1212 = vpop.f32.mrf.mxu0
      %1213 = vmatprep.mubr.bf16.mxu0 0
      %1214 = vmatmul.mubr.bf16.gmra.mxu0 %v1003
      %v1215 = vpop.f32.mrf.mxu0
      %v1216 = vadd.f32 %v1027, %v1215
      %v1217 = vpop.f32.mrf.mxu0
      %v1218 = vpop.f32.mrf.mxu0
      %v1219 = vadd.f32 %v1027, %v1218
      %v1220 = vpop.f32.mrf.mxu0
      %1221 = vmatprep.mubr.bf16.mxu0 0
      %1222 = vmatmul.mubr.bf16.gmra.mxu0 %v1004
      %v1223 = vpop.f32.mrf.mxu0
      %v1224 = vadd.f32 %v1027, %v1223
      %v1225 = vpop.f32.mrf.mxu0
      %v1226 = vpop.f32.mrf.mxu0
      %v1227 = vadd.f32 %v1027, %v1226
      %v1228 = vpop.f32.mrf.mxu0
      %1229 = vmatprep.mubr.bf16.mxu0 0
      %1230 = vmatmul.mubr.bf16.gmra.mxu0 %v1005
      %v1231 = vpop.f32.mrf.mxu0
      %v1232 = vadd.f32 %v1027, %v1231
      %v1233 = vpop.f32.mrf.mxu0
      %v1234 = vpop.f32.mrf.mxu0
      %v1235 = vadd.f32 %v1027, %v1234
      %v1236 = vpop.f32.mrf.mxu0
      %1237 = vdwg.mxu0
      %v1238 = vpack.c.bf16 %v1115, %v1112
      %v1239 = vpack.c.bf16 %v1123, %v1120
      %v1240 = vpack.c.bf16 %v1131, %v1128
      %v1241 = vpack.c.bf16 %v1139, %v1136
      %v1242 = vpack.c.bf16 %v1147, %v1144
      %v1243 = vpack.c.bf16 %v1155, %v1152
      %v1244 = vpack.c.bf16 %v1163, %v1160
      %v1245 = vpack.c.bf16 %v1171, %v1168
      %v1246 = vpack.c.bf16 %v1179, %v1176
      %v1247 = vpack.c.bf16 %v1187, %v1184
      %v1248 = vpack.c.bf16 %v1195, %v1192
      %v1249 = vpack.c.bf16 %v1203, %v1200
      %v1250 = vpack.c.bf16 %v1211, %v1208
      %v1251 = vpack.c.bf16 %v1219, %v1216
      %v1252 = vpack.c.bf16 %v1227, %v1224
      %v1253 = vpack.c.bf16 %v1235, %v1232
      %v1270 = vunpack.c.l.b16 %v1238
      %v1271 = vunpack.c.h.b16 %v1238
      %v1272 = vunpack.c.l.b16 %v1239
      %v1273 = vunpack.c.h.b16 %v1239
      %v1274 = vunpack.c.l.b16 %v1240
      %v1275 = vunpack.c.h.b16 %v1240
      %v1276 = vunpack.c.l.b16 %v1241
      %v1277 = vunpack.c.h.b16 %v1241
      %v1278 = vunpack.c.l.b16 %v1242
      %v1279 = vunpack.c.h.b16 %v1242
      %v1280 = vunpack.c.l.b16 %v1243
      %v1281 = vunpack.c.h.b16 %v1243
      %v1282 = vunpack.c.l.b16 %v1244
      %v1283 = vunpack.c.h.b16 %v1244
      %v1284 = vunpack.c.l.b16 %v1245
      %v1285 = vunpack.c.h.b16 %v1245
      %v1286 = vunpack.c.l.b16 %v1246
      %v1287 = vunpack.c.h.b16 %v1246
      %v1288 = vunpack.c.l.b16 %v1247
      %v1289 = vunpack.c.h.b16 %v1247
      %v1290 = vunpack.c.l.b16 %v1248
      %v1291 = vunpack.c.h.b16 %v1248
      %v1292 = vunpack.c.l.b16 %v1249
      %v1293 = vunpack.c.h.b16 %v1249
      %v1294 = vunpack.c.l.b16 %v1250
      %v1295 = vunpack.c.h.b16 %v1250
      %v1296 = vunpack.c.l.b16 %v1251
      %v1297 = vunpack.c.h.b16 %v1251
      %v1298 = vunpack.c.l.b16 %v1252
      %v1299 = vunpack.c.h.b16 %v1252
      %v1300 = vunpack.c.l.b16 %v1253
      %v1301 = vunpack.c.h.b16 %v1253
      %v1302 = vpack.c.b16 %v1270, %v1270
      %v1303 = vpack.c.b16 %v1271, %v1271
      %v1304 = vpack.c.b16 %v1272, %v1272
      %v1305 = vpack.c.b16 %v1273, %v1273
      %v1306 = vpack.c.b16 %v1274, %v1274
      %v1307 = vpack.c.b16 %v1275, %v1275
      %v1308 = vpack.c.b16 %v1276, %v1276
      %v1309 = vpack.c.b16 %v1277, %v1277
      %v1310 = vpack.c.b16 %v1278, %v1278
      %v1311 = vpack.c.b16 %v1279, %v1279
      %v1312 = vpack.c.b16 %v1280, %v1280
      %v1313 = vpack.c.b16 %v1281, %v1281
      %v1314 = vpack.c.b16 %v1282, %v1282
      %v1315 = vpack.c.b16 %v1283, %v1283
      %v1316 = vpack.c.b16 %v1284, %v1284
      %v1317 = vpack.c.b16 %v1285, %v1285
      %v1318 = vpack.c.b16 %v1286, %v1286
      %v1319 = vpack.c.b16 %v1287, %v1287
      %v1320 = vpack.c.b16 %v1288, %v1288
      %v1321 = vpack.c.b16 %v1289, %v1289
      %v1322 = vpack.c.b16 %v1290, %v1290
      %v1323 = vpack.c.b16 %v1291, %v1291
      %v1324 = vpack.c.b16 %v1292, %v1292
      %v1325 = vpack.c.b16 %v1293, %v1293
      %v1326 = vpack.c.b16 %v1294, %v1294
      %v1327 = vpack.c.b16 %v1295, %v1295
      %v1328 = vpack.c.b16 %v1296, %v1296
      %v1329 = vpack.c.b16 %v1297, %v1297
      %v1330 = vpack.c.b16 %v1298, %v1298
      %v1331 = vpack.c.b16 %v1299, %v1299
      %v1332 = vpack.c.b16 %v1300, %v1300
      %v1333 = vpack.c.b16 %v1301, %v1301
      %1366 = vst [vmem:[%s283] sm:$0xf] %v1302
      %1367 = vst [vmem:[%s283 + $0x4] sm:$0xf] %v1303
      %1368 = vst [vmem:[%s283 + $0x8] sm:$0xf] %v1304
      %1369 = vst [vmem:[%s283 + $0xc] sm:$0xf] %v1305
      %1370 = vst [vmem:[%s283 + $0x10] sm:$0xf] %v1306
      %1371 = vst [vmem:[%s283 + $0x14] sm:$0xf] %v1307
      %1372 = vst [vmem:[%s283 + $0x18] sm:$0xf] %v1308
      %1373 = vst [vmem:[%s283 + $0x1c] sm:$0xf] %v1309
      %1374 = vst [vmem:[%s283 + $0x20] sm:$0xf] %v1310
      %1375 = vst [vmem:[%s283 + $0x24] sm:$0xf] %v1311
      %1376 = vst [vmem:[%s283 + $0x28] sm:$0xf] %v1312
      %1377 = vst [vmem:[%s283 + $0x2c] sm:$0xf] %v1313
      %1378 = vst [vmem:[%s283 + $0x30] sm:$0xf] %v1314
      %1379 = vst [vmem:[%s283 + $0x34] sm:$0xf] %v1315
      %1380 = vst [vmem:[%s283 + $0x38] sm:$0xf] %v1316
      %1381 = vst [vmem:[%s283 + $0x3c] sm:$0xf] %v1317
      %1382 = vst [vmem:[%s283 + $0x40] sm:$0xf] %v1318
      %1383 = vst [vmem:[%s283 + $0x44] sm:$0xf] %v1319
      %1384 = vst [vmem:[%s283 + $0x48] sm:$0xf] %v1320
      %1385 = vst [vmem:[%s283 + $0x4c] sm:$0xf] %v1321
      %1386 = vst [vmem:[%s283 + $0x50] sm:$0xf] %v1322
      %1387 = vst [vmem:[%s283 + $0x54] sm:$0xf] %v1323
      %1388 = vst [vmem:[%s283 + $0x58] sm:$0xf] %v1324
      %1389 = vst [vmem:[%s283 + $0x5c] sm:$0xf] %v1325
      %1390 = vst [vmem:[%s283 + $0x60] sm:$0xf] %v1326
      %1391 = vst [vmem:[%s283 + $0x64] sm:$0xf] %v1327
      %1392 = vst [vmem:[%s283 + $0x68] sm:$0xf] %v1328
      %1393 = vst [vmem:[%s283 + $0x6c] sm:$0xf] %v1329
      %1394 = vst [vmem:[%s283 + $0x70] sm:$0xf] %v1330
      %1395 = vst [vmem:[%s283 + $0x74] sm:$0xf] %v1331
      %1396 = vst [vmem:[%s283 + $0x78] sm:$0xf] %v1332
      %1397 = vst [vmem:[%s283 + $0x7c] sm:$0xf] %v1333
      %s1398 = smul.u32 32, %s18
      %p1399 = scmp.lt.s32.totalorder %s1398, 63
      %s1400 = scalar_select %p1399, %s1398, 63
      %s1401 = smul.addr %s1400, 4
      %s1402 = scalar_lea.vmem %s7, %s1401
      // Predicated region
      $region49: #{hotswap_encoder_mlp.1} parent=47 // pred_check
        %p1403 = pneg %p188
      $region50: #{hotswap_encoder_mlp.1} parent=47 // pred_check_branch
        %1405 = sbr.rel (%p1403) target = $region52
      $region51: #{hotswap_encoder_mlp.1} parent=47 // pred_region
        %s1406 = smul.u32 32, %s18
      $region52: #{hotswap_encoder_mlp.1} parent=47 // pred_fallthru
        _
    $region48: #{hotswap_encoder_mlp.1} parent=5 // pred_fallthru
      _
    %p1407 = scmp.le.s32.totalorder 2, %s13
    // Predicated region
    $region53: #{hotswap_encoder_mlp.1} parent=5 // pred_check
      %p1408 = pneg %p1407
    $region54: #{hotswap_encoder_mlp.1} parent=5 // pred_check_branch
      %1410 = sbr.rel (%p1408) target = $region56
    $region55: #{hotswap_encoder_mlp.1} parent=5 // pred_region
      %s1411 = ssub.s32 %s13, 2
      // Predicated region
      $region57: #{hotswap_encoder_mlp.1} parent=55 // pred_check
        %p1412 = pneg %p194
      $region58: #{hotswap_encoder_mlp.1} parent=55 // pred_check_branch
        %1414 = sbr.rel (%p1412) target = $region60
      $region59: #{hotswap_encoder_mlp.1} parent=55 // pred_region
        %s1415 = smul.u32 32, %s19
        %p1416 = scmp.lt.s32.totalorder %s1415, 63
        %s1417 = scalar_select %p1416, %s1415, 63
        %s1418 = smul.addr %s1417, 4
        %s1419 = scalar_lea.vmem %s7, %s1418
      $region60: #{hotswap_encoder_mlp.1} parent=55 // pred_fallthru
        _
    $region56: #{hotswap_encoder_mlp.1} parent=5 // pred_fallthru
      _
  $region6: #{hotswap_encoder_mlp.1} parent=0 // loop_footer
    %s17 = sadd.s32 1, %s13
  $region7: #{hotswap_encoder_mlp.1} parent=0 // loop_footer_branch
    %12 = sbr.rel target = $region3
  $region8: #{hotswap_encoder_mlp.1} parent=0 // loop_exit
    _

</llo_original>
